<compile_context>
chip_gen: v6e
topology: v6e:2x2x1
jax: 0.10.0
libtpu: 0.0.40
codegen_flags: <defaults>
</compile_context>

<pallas_src>
import functools

import jax
import jax.numpy as jnp
from jax.experimental import pallas as pl
from jax.experimental.pallas import tpu as pltpu


def _bunet_loss_kernel(fp_ref, ft_ref, bp_ref, bt_ref, cp_ref, ct_ref,
                       out_ref, acc_f, acc_b, acc_r,
                       *, inv_n, eps, lr_type, h_total, bh, acc_rows,
                       need_h_mask):
    hb = pl.program_id(1)
    last_hb = pl.num_programs(1) - 1

    @pl.when(hb == 0)
    def _init():
        acc_f[...] = jnp.zeros_like(acc_f)
        acc_b[...] = jnp.zeros_like(acc_b)
        acc_r[...] = jnp.zeros_like(acc_r)

    w = fp_ref.shape[-1]

    def partial_reduce(v):
        # (bn, bh, W) f32 -> (acc_rows, W).  Fast path (bh % 8 == 0): pure VPU
        # vreg adds; the cross-lane/sublane reduce is deferred to finalize.
        if acc_rows == 8:
            return v.reshape(-1, 8, w).sum(axis=0)
        # Small/odd-shape fallback (bh == H, H % 8 != 0): tiny inputs only.
        return jnp.sum(v, axis=0).sum(axis=0, keepdims=True)

    def accumulate(mask):
        # Casts to f32 happen in-kernel (VPU work hidden under the DMA stream).
        fp = fp_ref[...].astype(jnp.float32)
        ft = ft_ref[...].astype(jnp.float32)
        bp = bp_ref[...].astype(jnp.float32)
        bt = bt_ref[...].astype(jnp.float32)
        cp = cp_ref[...].astype(jnp.float32)
        ct = jnp.clip(ct_ref[...].astype(jnp.float32), eps, 1.0 - eps)

        def bce(x, z):
            # Numerically stable BCEWithLogits (matches torch BCEWithLogitsLoss):
            #   max(x, 0) - x*z + log(1 + exp(-|x|))
            # log argument is in (1, 2], so plain log is accurate (log1p kept
            # out for Mosaic-lowering safety; difference is < 1e-7 absolute).
            return (jnp.maximum(x, 0.0) - x * z
                    + jnp.log(1.0 + jnp.exp(-jnp.abs(x))))

        lf = bce(fp, ft)                       # L_F per-element
        lb = bce(bp, bt)                       # L_B per-element
        if lr_type == "mse":
            d = cp - ct
            lr = d * d                         # L_R per-element (MSE)
        else:
            lr = bce(cp, ct)                   # L_R per-element (BCE)

        if mask is not None:
            # where() selects (not multiplies), so garbage/NaN in OOB rows is
            # dropped cleanly.
            lf = jnp.where(mask, lf, 0.0)
            lb = jnp.where(mask, lb, 0.0)
            lr = jnp.where(mask, lr, 0.0)

        acc_f[...] += partial_reduce(lf)
        acc_b[...] += partial_reduce(lb)
        acc_r[...] += partial_reduce(lr)

    if need_h_mask:
        # Only the last h-block contains rows past H; gate the mask to it.
        is_tail = hb == last_hb

        @pl.when(jnp.logical_not(is_tail))
        def _fast():
            accumulate(None)

        @pl.when(is_tail)
        def _tail():
            row = jax.lax.broadcasted_iota(jnp.int32, fp_ref.shape, 1)
            accumulate(hb * bh + row < h_total)
    else:
        accumulate(None)

    @pl.when(hb == last_hb)
    def _finalize():
        out_ref[0, 0] = jnp.sum(acc_f[...]) * inv_n
        out_ref[0, 1] = jnp.sum(acc_b[...]) * inv_n
        out_ref[0, 2] = jnp.sum(acc_r[...]) * inv_n


def bunet_loss(fuse_pred, fuse_target, cd_pred, cd_target, bnd_pred, bnd_target,
               *, alpha, beta, gamma, l_r="mse", eps=1e-6,
               vmem_budget_bytes=16 << 20):
    """Forward pass of BUNetLoss.  Returns (loss, (L_F, L_B, L_R)).

    vmem_budget_bytes: target size of the double-buffered input working set.
    Default 16 MiB is safe on every generation; ~24-32 MiB squeezes out a few
    more percent on v6e (128 MiB physical VMEM).
    """
    if l_r not in ("mse", "bce"):
        raise ValueError("invalid type for l_r")

    def view3d(x):
        # Collapse all leading dims; the last two dims are untouched so this is
        # a layout-preserving (copy-free) reshape on TPU tiled layouts.
        if x.ndim < 2:
            raise ValueError("inputs must be at least 2-D")
        return x.reshape((-1,) + x.shape[-2:])

    # fuse_target.unsqueeze(1) / bnd_target.unsqueeze(1) only add a size-1 dim;
    # element order is identical, so the (N, H, W) views line up one-to-one.
    fp, ft = view3d(fuse_pred), view3d(fuse_target)
    bp, bt = view3d(bnd_pred), view3d(bnd_target)
    cp, ct = view3d(cd_pred), view3d(cd_target)
    xs = (fp, ft, bp, bt, cp, ct)
    if any(x.shape != fp.shape for x in xs):
        raise ValueError("all inputs must describe the same (N, H, W) volume")

    n_img, h, w = fp.shape
    n_total = n_img * h * w

    # ---- tile selection (native layout; no padding in HBM) -----------------
    bpe = sum(x.dtype.itemsize for x in xs)        # bytes/element over 6 inputs
    row_bytes = w * bpe * 2                        # one H-row, double-buffered
    rows_budget = max(8, vmem_budget_bytes // row_bytes)

    if h <= rows_budget:
        # Whole images per step.  Pick bn as the largest divisor of N within
        # budget, so the batch axis never needs a mask.
        bn_cap = max(1, min(n_img, rows_budget // h))
        bn = 1
        for d in range(bn_cap, 0, -1):
            if n_img % d == 0:
                bn = d
                break
        bh = h
    else:
        # Split each image over H in 8-row-aligned chunks; tail rows masked
        # in-kernel (gated to the last h-block only).
        bn = 1
        bh = max(8, (rows_budget // 8) * 8)

    nb_n = n_img // bn
    nb_h = pl.cdiv(h, bh)
    need_h_mask = (h % bh) != 0
    acc_rows = 8 if bh % 8 == 0 else 1

    in_bytes = bn * bh * w * bpe * 2               # double-buffered working set
    vmem_limit = int(min(96 << 20, max(32 << 20, 3 * in_bytes)))

    kernel = functools.partial(
        _bunet_loss_kernel,
        inv_n=1.0 / float(n_total), eps=float(eps), lr_type=l_r,
        h_total=h, bh=bh, acc_rows=acc_rows, need_h_mask=need_h_mask)

    in_spec = pl.BlockSpec((bn, bh, w), lambda nb, hb: (nb, hb, 0))

    partials = pl.pallas_call(
        kernel,
        out_shape=jax.ShapeDtypeStruct((nb_n, 3), jnp.float32),
        grid_spec=pltpu.PrefetchScalarGridSpec(
            num_scalar_prefetch=0,
            grid=(nb_n, nb_h),
            in_specs=[in_spec] * 6,
            out_specs=pl.BlockSpec((1, 3), lambda nb, hb: (nb, 0),
                                   memory_space=pltpu.SMEM),
            scratch_shapes=[pltpu.VMEM((acc_rows, w), jnp.float32)
                            for _ in range(3)]),
        compiler_params=pltpu.CompilerParams(
            dimension_semantics=("parallel", "arbitrary"),
            vmem_limit_bytes=vmem_limit),
    )(fp, ft, bp, bt, cp, ct)

    # Each row already carries the 1/N scaling -> summing gives the means.
    losses = jnp.sum(partials, axis=0)
    L_F, L_B, L_R = losses[0], losses[1], losses[2]
    loss = gamma * L_F + beta * L_B + alpha * L_R
    return loss, (L_F, L_B, L_R)


# ----------------------------- reference & tests -----------------------------

def _reference(fuse_pred, fuse_target, cd_pred, cd_target, bnd_pred, bnd_target,
               *, alpha, beta, gamma, l_r="mse", eps=1e-6):
    def bce_mean(x, z):
        x = x.reshape(-1).astype(jnp.float32)
        z = z.reshape(-1).astype(jnp.float32)
        return jnp.mean(jnp.maximum(x, 0.0) - x * z
                        + jnp.log1p(jnp.exp(-jnp.abs(x))))

    L_F = bce_mean(fuse_pred, fuse_target)
    L_B = bce_mean(bnd_pred, bnd_target)
    ct = jnp.clip(cd_target.reshape(-1).astype(jnp.float32), eps, 1.0 - eps)
    cp = cd_pred.reshape(-1).astype(jnp.float32)
    if l_r == "mse":
        L_R = jnp.mean((cp - ct) ** 2)
    else:
        L_R = jnp.mean(jnp.maximum(cp, 0.0) - cp * ct
                       + jnp.log1p(jnp.exp(-jnp.abs(cp))))
    return gamma * L_F + beta * L_B + alpha * L_R, (L_F, L_B, L_R)


def _make_inputs(key, N, H, W, pred_dtype=jnp.float32):
    k1, k2, k3, k4, k5, k6 = jax.random.split(key, 6)
    fuse_pred = jax.random.normal(k1, (N, 1, H, W)).astype(pred_dtype)
    fuse_target = (jax.random.uniform(k2, (N, H, W)) > 0.5).astype(jnp.float32)
    bnd_pred = jax.random.normal(k3, (N, 1, H, W)).astype(pred_dtype)
    bnd_target = (jax.random.uniform(k4, (N, H, W)) > 0.5).astype(jnp.float32)
    cd_pred = jax.random.normal(k5, (N, 1, H, W)).astype(pred_dtype)
    cd_target = jax.random.uniform(k6, (N, 1, H, W), jnp.float32)
    return fuse_pred, fuse_target, cd_pred, cd_target, bnd_pred, bnd_target


def _check(args, hyper, rtol, atol, **kernel_kwargs):
    loss, (L_F, L_B, L_R) = bunet_loss(*args, **hyper, **kernel_kwargs)
    jax.block_until_ready(loss)
    ref_loss, (rF, rB, rR) = _reference(*args, **hyper)
    assert jnp.allclose(loss, ref_loss, rtol=rtol, atol=atol), (loss, ref_loss)
    assert jnp.allclose(L_F, rF, rtol=rtol, atol=atol), (L_F, rF)
    assert jnp.allclose(L_B, rB, rtol=rtol, atol=atol), (L_B, rB)
    assert jnp.allclose(L_R, rR, rtol=rtol, atol=atol), (L_R, rR)


if __name__ == "__main__":
    key = jax.random.PRNGKey(0)
    k1, k2, k3, k4 = jax.random.split(key, 4)

    # 1) Small baseline: whole-batch single block (bn=2), mse, H%8==0 fast path.
    args = _make_inputs(k1, N=2, H=16, W=16)
    _check(args, dict(alpha=0.5, beta=1.0, gamma=1.0, l_r="mse", eps=1e-6),
           rtol=1e-5, atol=1e-5)

    # 2) Odd H and W (H % 8 != 0, W < 128 -> fallback row accumulator), bce L_R.
    args = _make_inputs(k2, N=2, H=15, W=17)
    _check(args, dict(alpha=0.25, beta=0.75, gamma=1.5, l_r="bce", eps=1e-6),
           rtol=1e-5, atol=1e-5)

    # 3) bf16 predictions, N=3 with a tight budget -> bn falls back to a divisor
    #    of N (1), multi-block parallel batch axis, no masks.
    args = _make_inputs(k3, N=3, H=16, W=128, pred_dtype=jnp.bfloat16)
    _check(args, dict(alpha=0.5, beta=1.0, gamma=1.0, l_r="mse", eps=1e-6),
           rtol=1e-4, atol=1e-5,
           vmem_budget_bytes=32 * 128 * 18 * 2)      # rows_budget = 32

    # 4) H not a multiple of the H-tile -> exercises the pl.when-gated tail mask.
    args = _make_inputs(k4, N=2, H=40, W=128)
    _check(args, dict(alpha=1.0, beta=0.5, gamma=2.0, l_r="mse", eps=1e-6),
           rtol=1e-5, atol=1e-5,
           vmem_budget_bytes=16 * 128 * 24 * 2)      # rows_budget = 16 -> bh=16

    print("KERNEL_OK")
</pallas_src>

<mosaic_0001>
module attributes {stable_mosaic.version = 11 : i64} {
  func.func @_bunet_loss_kernel(%arg0: i32, %arg1: i32, %arg2: memref<2x16x16xf32, #tpu.memory_space<vmem>>, %arg3: memref<2x16x16xf32, #tpu.memory_space<vmem>>, %arg4: memref<2x16x16xf32, #tpu.memory_space<vmem>>, %arg5: memref<2x16x16xf32, #tpu.memory_space<vmem>>, %arg6: memref<2x16x16xf32, #tpu.memory_space<vmem>>, %arg7: memref<2x16x16xf32, #tpu.memory_space<vmem>>, %arg8: memref<1x3xf32, #tpu.memory_space<smem>>, %arg9: memref<8x16xf32, #tpu.memory_space<vmem>>, %arg10: memref<8x16xf32, #tpu.memory_space<vmem>>, %arg11: memref<8x16xf32, #tpu.memory_space<vmem>>) attributes {dimension_semantics = [#tpu.dimension_semantics<parallel>, #tpu.dimension_semantics<arbitrary>], iteration_bounds = array<i64: 1, 1>, scalar_prefetch = 0 : i64, scratch_operands = 3 : i64, tpu.core_type = #tpu.core_type<tc>, window_params = [{transform_indices = @transform_0, window_bounds = array<i64: 2, 16, 16>}, {transform_indices = @transform_1, window_bounds = array<i64: 2, 16, 16>}, {transform_indices = @transform_2, window_bounds = array<i64: 2, 16, 16>}, {transform_indices = @transform_3, window_bounds = array<i64: 2, 16, 16>}, {transform_indices = @transform_4, window_bounds = array<i64: 2, 16, 16>}, {transform_indices = @transform_5, window_bounds = array<i64: 2, 16, 16>}, {transform_indices = @transform_6, window_bounds = array<i64: 1, 3>}]} {
    %c0_i32 = arith.constant 0 : i32
    %0 = arith.cmpi eq, %arg1, %c0_i32 : i32
    %1 = arith.extui %0 : i1 to i32
    %c0_i32_0 = arith.constant 0 : i32
    %2 = arith.cmpi ne, %1, %c0_i32_0 : i32
    scf.if %2 {
      %cst_42 = arith.constant 0.000000e+00 : f32
      %57 = vector.broadcast %cst_42 : f32 to vector<8x16xf32>
      %c0_43 = arith.constant 0 : index
      %c0_44 = arith.constant 0 : index
      %58 = vector.load %arg9[%c0_43, %c0_44] : memref<8x16xf32, #tpu.memory_space<vmem>>, vector<8x16xf32>
      tpu.vector_store %arg9[%c0_43, %c0_44], %57 {strides = array<i32>} : memref<8x16xf32, #tpu.memory_space<vmem>>, vector<8x16xf32>,
      %cst_45 = arith.constant 0.000000e+00 : f32
      %59 = vector.broadcast %cst_45 : f32 to vector<8x16xf32>
      %c0_46 = arith.constant 0 : index
      %c0_47 = arith.constant 0 : index
      %60 = vector.load %arg10[%c0_46, %c0_47] : memref<8x16xf32, #tpu.memory_space<vmem>>, vector<8x16xf32>
      tpu.vector_store %arg10[%c0_46, %c0_47], %59 {strides = array<i32>} : memref<8x16xf32, #tpu.memory_space<vmem>>, vector<8x16xf32>,
      %cst_48 = arith.constant 0.000000e+00 : f32
      %61 = vector.broadcast %cst_48 : f32 to vector<8x16xf32>
      %c0_49 = arith.constant 0 : index
      %c0_50 = arith.constant 0 : index
      %62 = vector.load %arg11[%c0_49, %c0_50] : memref<8x16xf32, #tpu.memory_space<vmem>>, vector<8x16xf32>
      tpu.vector_store %arg11[%c0_49, %c0_50], %61 {strides = array<i32>} : memref<8x16xf32, #tpu.memory_space<vmem>>, vector<8x16xf32>,
    } else {
    }
    %c0 = arith.constant 0 : index
    %c0_1 = arith.constant 0 : index
    %c0_2 = arith.constant 0 : index
    %3 = vector.load %arg2[%c0, %c0_1, %c0_2] : memref<2x16x16xf32, #tpu.memory_space<vmem>>, vector<2x16x16xf32>
    %c0_3 = arith.constant 0 : index
    %c0_4 = arith.constant 0 : index
    %c0_5 = arith.constant 0 : index
    %4 = vector.load %arg3[%c0_3, %c0_4, %c0_5] : memref<2x16x16xf32, #tpu.memory_space<vmem>>, vector<2x16x16xf32>
    %c0_6 = arith.constant 0 : index
    %c0_7 = arith.constant 0 : index
    %c0_8 = arith.constant 0 : index
    %5 = vector.load %arg4[%c0_6, %c0_7, %c0_8] : memref<2x16x16xf32, #tpu.memory_space<vmem>>, vector<2x16x16xf32>
    %c0_9 = arith.constant 0 : index
    %c0_10 = arith.constant 0 : index
    %c0_11 = arith.constant 0 : index
    %6 = vector.load %arg5[%c0_9, %c0_10, %c0_11] : memref<2x16x16xf32, #tpu.memory_space<vmem>>, vector<2x16x16xf32>
    %c0_12 = arith.constant 0 : index
    %c0_13 = arith.constant 0 : index
    %c0_14 = arith.constant 0 : index
    %7 = vector.load %arg6[%c0_12, %c0_13, %c0_14] : memref<2x16x16xf32, #tpu.memory_space<vmem>>, vector<2x16x16xf32>
    %c0_15 = arith.constant 0 : index
    %c0_16 = arith.constant 0 : index
    %c0_17 = arith.constant 0 : index
    %8 = vector.load %arg7[%c0_15, %c0_16, %c0_17] : memref<2x16x16xf32, #tpu.memory_space<vmem>>, vector<2x16x16xf32>
    %cst = arith.constant 9.99999997E-7 : f32
    %cst_18 = arith.constant 0.999998986 : f32
    %9 = vector.broadcast %cst : f32 to vector<2x16x16xf32>
    %10 = arith.maximumf %9, %8 : vector<2x16x16xf32>
    %11 = vector.broadcast %cst_18 : f32 to vector<2x16x16xf32>
    %12 = arith.minimumf %11, %10 : vector<2x16x16xf32>
    %cst_19 = arith.constant 0.000000e+00 : f32
    %13 = vector.broadcast %cst_19 : f32 to vector<2x16x16xf32>
    %14 = arith.maximumf %3, %13 : vector<2x16x16xf32>
    %15 = arith.mulf %3, %4 : vector<2x16x16xf32>
    %16 = arith.subf %14, %15 : vector<2x16x16xf32>
    %17 = math.absf %3 : vector<2x16x16xf32>
    %cst_20 = arith.constant 0.000000e+00 : f32
    %18 = vector.broadcast %cst_20 : f32 to vector<2x16x16xf32>
    %19 = arith.subf %18, %17 : vector<2x16x16xf32>
    %20 = math.exp %19 : vector<2x16x16xf32>
    %cst_21 = arith.constant 1.000000e+00 : f32
    %21 = vector.broadcast %cst_21 : f32 to vector<2x16x16xf32>
    %22 = arith.addf %21, %20 : vector<2x16x16xf32>
    %23 = math.log %22 : vector<2x16x16xf32>
    %24 = arith.addf %16, %23 : vector<2x16x16xf32>
    %cst_22 = arith.constant 0.000000e+00 : f32
    %25 = vector.broadcast %cst_22 : f32 to vector<2x16x16xf32>
    %26 = arith.maximumf %5, %25 : vector<2x16x16xf32>
    %27 = arith.mulf %5, %6 : vector<2x16x16xf32>
    %28 = arith.subf %26, %27 : vector<2x16x16xf32>
    %29 = math.absf %5 : vector<2x16x16xf32>
    %cst_23 = arith.constant 0.000000e+00 : f32
    %30 = vector.broadcast %cst_23 : f32 to vector<2x16x16xf32>
    %31 = arith.subf %30, %29 : vector<2x16x16xf32>
    %32 = math.exp %31 : vector<2x16x16xf32>
    %cst_24 = arith.constant 1.000000e+00 : f32
    %33 = vector.broadcast %cst_24 : f32 to vector<2x16x16xf32>
    %34 = arith.addf %33, %32 : vector<2x16x16xf32>
    %35 = math.log %34 : vector<2x16x16xf32>
    %36 = arith.addf %28, %35 : vector<2x16x16xf32>
    %37 = arith.subf %7, %12 : vector<2x16x16xf32>
    %38 = arith.mulf %37, %37 : vector<2x16x16xf32>
    %c0_25 = arith.constant 0 : index
    %c0_26 = arith.constant 0 : index
    %39 = vector.load %arg9[%c0_25, %c0_26] : memref<8x16xf32, #tpu.memory_space<vmem>>, vector<8x16xf32>
    %40 = vector.shape_cast %24 : vector<2x16x16xf32> to vector<4x8x16xf32>
    %cst_27 = arith.constant dense<0.000000e+00> : vector<8x16xf32>
    %41 = vector.multi_reduction <add>, %40, %cst_27 [0] : vector<4x8x16xf32> to vector<8x16xf32>
    %42 = arith.addf %39, %41 : vector<8x16xf32>
    %c0_28 = arith.constant 0 : index
    %c0_29 = arith.constant 0 : index
    %43 = vector.load %arg9[%c0_28, %c0_29] : memref<8x16xf32, #tpu.memory_space<vmem>>, vector<8x16xf32>
    tpu.vector_store %arg9[%c0_28, %c0_29], %42 {strides = array<i32>} : memref<8x16xf32, #tpu.memory_space<vmem>>, vector<8x16xf32>,
    %c0_30 = arith.constant 0 : index
    %c0_31 = arith.constant 0 : index
    %44 = vector.load %arg10[%c0_30, %c0_31] : memref<8x16xf32, #tpu.memory_space<vmem>>, vector<8x16xf32>
    %45 = vector.shape_cast %36 : vector<2x16x16xf32> to vector<4x8x16xf32>
    %cst_32 = arith.constant dense<0.000000e+00> : vector<8x16xf32>
    %46 = vector.multi_reduction <add>, %45, %cst_32 [0] : vector<4x8x16xf32> to vector<8x16xf32>
    %47 = arith.addf %44, %46 : vector<8x16xf32>
    %c0_33 = arith.constant 0 : index
    %c0_34 = arith.constant 0 : index
    %48 = vector.load %arg10[%c0_33, %c0_34] : memref<8x16xf32, #tpu.memory_space<vmem>>, vector<8x16xf32>
    tpu.vector_store %arg10[%c0_33, %c0_34], %47 {strides = array<i32>} : memref<8x16xf32, #tpu.memory_space<vmem>>, vector<8x16xf32>,
    %c0_35 = arith.constant 0 : index
    %c0_36 = arith.constant 0 : index
    %49 = vector.load %arg11[%c0_35, %c0_36] : memref<8x16xf32, #tpu.memory_space<vmem>>, vector<8x16xf32>
    %50 = vector.shape_cast %38 : vector<2x16x16xf32> to vector<4x8x16xf32>
    %cst_37 = arith.constant dense<0.000000e+00> : vector<8x16xf32>
    %51 = vector.multi_reduction <add>, %50, %cst_37 [0] : vector<4x8x16xf32> to vector<8x16xf32>
    %52 = arith.addf %49, %51 : vector<8x16xf32>
    %c0_38 = arith.constant 0 : index
    %c0_39 = arith.constant 0 : index
    %53 = vector.load %arg11[%c0_38, %c0_39] : memref<8x16xf32, #tpu.memory_space<vmem>>, vector<8x16xf32>
    tpu.vector_store %arg11[%c0_38, %c0_39], %52 {strides = array<i32>} : memref<8x16xf32, #tpu.memory_space<vmem>>, vector<8x16xf32>,
    %c0_i32_40 = arith.constant 0 : i32
    %54 = arith.cmpi eq, %arg1, %c0_i32_40 : i32
    %55 = arith.extui %54 : i1 to i32
    %c0_i32_41 = arith.constant 0 : i32
    %56 = arith.cmpi ne, %55, %c0_i32_41 : i32
    scf.if %56 {
      %c0_42 = arith.constant 0 : index
      %c0_43 = arith.constant 0 : index
      %57 = vector.load %arg9[%c0_42, %c0_43] : memref<8x16xf32, #tpu.memory_space<vmem>>, vector<8x16xf32>
      %58 = vector.shape_cast %57 : vector<8x16xf32> to vector<1x8x16xf32>
      %cst_44 = arith.constant dense<0.000000e+00> : vector<1xf32>
      %59 = vector.multi_reduction <add>, %58, %cst_44 [1, 2] : vector<1x8x16xf32> to vector<1xf32>
      %60 = vector.shape_cast %59 : vector<1xf32> to vector<1x1x1xf32>
      %61 = vector.extract %60[0, 0, 0] : f32 from vector<1x1x1xf32>
      %cst_45 = arith.constant 0.001953125 : f32
      %62 = arith.mulf %61, %cst_45 : f32
      %c0_46 = arith.constant 0 : index
      %c0_47 = arith.constant 0 : index
      %63 = memref.load %arg8[%c0_46, %c0_47] : memref<1x3xf32, #tpu.memory_space<smem>>
      memref.store %62, %arg8[%c0_46, %c0_47] : memref<1x3xf32, #tpu.memory_space<smem>>
      %c0_48 = arith.constant 0 : index
      %c0_49 = arith.constant 0 : index
      %64 = vector.load %arg10[%c0_48, %c0_49] : memref<8x16xf32, #tpu.memory_space<vmem>>, vector<8x16xf32>
      %65 = vector.shape_cast %64 : vector<8x16xf32> to vector<1x8x16xf32>
      %cst_50 = arith.constant dense<0.000000e+00> : vector<1xf32>
      %66 = vector.multi_reduction <add>, %65, %cst_50 [1, 2] : vector<1x8x16xf32> to vector<1xf32>
      %67 = vector.shape_cast %66 : vector<1xf32> to vector<1x1x1xf32>
      %68 = vector.extract %67[0, 0, 0] : f32 from vector<1x1x1xf32>
      %cst_51 = arith.constant 0.001953125 : f32
      %69 = arith.mulf %68, %cst_51 : f32
      %c0_52 = arith.constant 0 : index
      %c1 = arith.constant 1 : index
      %70 = memref.load %arg8[%c0_52, %c1] : memref<1x3xf32, #tpu.memory_space<smem>>
      memref.store %69, %arg8[%c0_52, %c1] : memref<1x3xf32, #tpu.memory_space<smem>>
      %c0_53 = arith.constant 0 : index
      %c0_54 = arith.constant 0 : index
      %71 = vector.load %arg11[%c0_53, %c0_54] : memref<8x16xf32, #tpu.memory_space<vmem>>, vector<8x16xf32>
      %72 = vector.shape_cast %71 : vector<8x16xf32> to vector<1x8x16xf32>
      %cst_55 = arith.constant dense<0.000000e+00> : vector<1xf32>
      %73 = vector.multi_reduction <add>, %72, %cst_55 [1, 2] : vector<1x8x16xf32> to vector<1xf32>
      %74 = vector.shape_cast %73 : vector<1xf32> to vector<1x1x1xf32>
      %75 = vector.extract %74[0, 0, 0] : f32 from vector<1x1x1xf32>
      %cst_56 = arith.constant 0.001953125 : f32
      %76 = arith.mulf %75, %cst_56 : f32
      %c0_57 = arith.constant 0 : index
      %c2 = arith.constant 2 : index
      %77 = memref.load %arg8[%c0_57, %c2] : memref<1x3xf32, #tpu.memory_space<smem>>
      memref.store %76, %arg8[%c0_57, %c2] : memref<1x3xf32, #tpu.memory_space<smem>>
    } else {
    }
    return
  }
  func.func @transform_0(%arg0: i32, %arg1: i32) -> (i32, i32, i32) {
    %c0_i32 = arith.constant 0 : i32
    %c0_i32_0 = arith.constant 0 : i32
    return %arg0, %arg1, %c0_i32 : i32, i32, i32
  }
  func.func @transform_1(%arg0: i32, %arg1: i32) -> (i32, i32, i32) {
    %c0_i32 = arith.constant 0 : i32
    %c0_i32_0 = arith.constant 0 : i32
    return %arg0, %arg1, %c0_i32 : i32, i32, i32
  }
  func.func @transform_2(%arg0: i32, %arg1: i32) -> (i32, i32, i32) {
    %c0_i32 = arith.constant 0 : i32
    %c0_i32_0 = arith.constant 0 : i32
    return %arg0, %arg1, %c0_i32 : i32, i32, i32
  }
  func.func @transform_3(%arg0: i32, %arg1: i32) -> (i32, i32, i32) {
    %c0_i32 = arith.constant 0 : i32
    %c0_i32_0 = arith.constant 0 : i32
    return %arg0, %arg1, %c0_i32 : i32, i32, i32
  }
  func.func @transform_4(%arg0: i32, %arg1: i32) -> (i32, i32, i32) {
    %c0_i32 = arith.constant 0 : i32
    %c0_i32_0 = arith.constant 0 : i32
    return %arg0, %arg1, %c0_i32 : i32, i32, i32
  }
  func.func @transform_5(%arg0: i32, %arg1: i32) -> (i32, i32, i32) {
    %c0_i32 = arith.constant 0 : i32
    %c0_i32_0 = arith.constant 0 : i32
    return %arg0, %arg1, %c0_i32 : i32, i32, i32
  }
  func.func @transform_6(%arg0: i32, %arg1: i32) -> (i32, i32) {
    %c0_i32 = arith.constant 0 : i32
    %c0_i32_0 = arith.constant 0 : i32
    return %arg0, %c0_i32 : i32, i32
  }
}

</mosaic_0001>

<llo_original>
// kernel: tpu_custom_call.1
$region0: #{tpu_custom_call.1}
  #allocation0 [shape = 'u32[]', space=smem, size = 0x4, offset = 0x4, fixed_abs, tag = 'smem constant byte address 0x4 - core index']
  #allocation1 [shape = 'u32[144,128]{1,0:T(1,128)}', space=vmem, size = 0x12000, scoped, tag = 'internal scratch']
  #allocation2 [shape = 'f32[8,16]{1,0:T(8,128)}', space=vmem, size = 0x1000, scoped, tag = 'scratch operand']
  #allocation3 [shape = 'f32[8,16]{1,0:T(8,128)}', space=vmem, size = 0x1000, scoped, tag = 'scratch operand']
  #allocation4 [shape = 'f32[8,16]{1,0:T(8,128)}', space=vmem, size = 0x1000, scoped, tag = 'scratch operand']
  %s0 = inlined_call_operand.hbm [shape: f32[2,16,16], index: 0, kind: input, shape index: {}]
  %s1 = inlined_call_operand.hbm [shape: f32[2,16,16], index: 1, kind: input, shape index: {}]
  %s2 = inlined_call_operand.hbm [shape: f32[2,16,16], index: 2, kind: input, shape index: {}]
  %s3 = inlined_call_operand.hbm [shape: f32[2,16,16], index: 3, kind: input, shape index: {}]
  %s4 = inlined_call_operand.hbm [shape: f32[2,16,16], index: 4, kind: input, shape index: {}]
  %s5 = inlined_call_operand.hbm [shape: f32[2,16,16], index: 5, kind: input, shape index: {}]
  %s6 = inlined_call_operand.hbm [shape: f32[1,3], index: 6, kind: output, shape index: {}]
  %s7 = sld [smem:[#allocation0]]
  $region66: #{tpu_custom_call.1} parent=0
    _
  %s9 = ssub.s32 1, %s7
  %s10 = scalar_select 0, %s9, %s7
  $region1: #{tpu_custom_call.1} parent=0
    #allocation5 [shape = 'u8[16384]{0}', space=vmem, size = 0x4000, scoped, tag = 'input window, operand 0, single buffered']
    #allocation6 [shape = 's32[1]{0}', space=sflag, size = 0x4, scoped, tag = 'scoped memory for tpu_custom_call.1']
    #allocation7 [shape = 's32[1]{0}', space=sflag, size = 0x4, scoped, tag = 'scoped memory for tpu_custom_call.1']
    #allocation8 [shape = 'u8[16384]{0}', space=vmem, size = 0x4000, scoped, tag = 'input window, operand 1, single buffered']
    #allocation9 [shape = 's32[1]{0}', space=sflag, size = 0x4, scoped, tag = 'scoped memory for tpu_custom_call.1']
    #allocation10 [shape = 'u8[16384]{0}', space=vmem, size = 0x4000, scoped, tag = 'input window, operand 2, single buffered']
    #allocation11 [shape = 'u8[16384]{0}', space=vmem, size = 0x4000, scoped, tag = 'input window, operand 3, single buffered']
    #allocation12 [shape = 's32[1]{0}', space=sflag, size = 0x4, scoped, tag = 'scoped memory for tpu_custom_call.1']
    #allocation13 [shape = 'u8[16384]{0}', space=vmem, size = 0x4000, scoped, tag = 'input window, operand 4, single buffered']
    #allocation14 [shape = 'u8[16384]{0}', space=vmem, size = 0x4000, scoped, tag = 'input window, operand 5, single buffered']
    #allocation15 [shape = 's32[1]{0}', space=sflag, size = 0x4, scoped, tag = 'scoped memory for tpu_custom_call.1']
    #allocation16 [shape = 'u8[512]{0}', space=smem, size = 0x200, scoped, tag = 'output window, operand 0, single buffered']
    %11 = vsyncpa [#allocation6], 0
    %12 = vsyncpa [#allocation9], 0
    %13 = vsyncpa [#allocation12], 0
    %14 = vsyncpa [#allocation15], 0
    %15 = vsyncpa [#allocation7], 0
    // Predicated region
    $region2: #{tpu_custom_call.1} parent=1 // pred_check
      _
    $region3: #{tpu_custom_call.1} parent=1 // pred_check_branch
      %17 = sbr.rel (0) target = $region5
    $region4: #{tpu_custom_call.1} parent=1 // pred_region
      %s19 = ssub.s32 512, 512
      %20 = vsyncadd [#allocation6], %s19
      %s21 = sshll.u32 [#allocation5], 4
      %s22 = int_to_ptr.vmem [resolvable:$true] %s21
      %27 = dma.hbm_to_vmem [thread:$0]  %s0, 512, %s22, [#allocation6], 128, 128, 8
    $region5: #{tpu_custom_call.1} parent=1 // pred_fallthru
      _
    // Predicated region
    $region6: #{tpu_custom_call.1} parent=1 // pred_check
      _
    $region7: #{tpu_custom_call.1} parent=1 // pred_check_branch
      %29 = sbr.rel (0) target = $region9
    $region8: #{tpu_custom_call.1} parent=1 // pred_region
      %s31 = ssub.s32 512, 512
      %32 = vsyncadd [#allocation9], %s31
      %s33 = sshll.u32 [#allocation8], 4
      %s34 = int_to_ptr.vmem [resolvable:$true] %s33
      %39 = dma.hbm_to_vmem [thread:$0]  %s1, 512, %s34, [#allocation9], 128, 128, 8
    $region9: #{tpu_custom_call.1} parent=1 // pred_fallthru
      _
    // Predicated region
    $region10: #{tpu_custom_call.1} parent=1 // pred_check
      _
    $region11: #{tpu_custom_call.1} parent=1 // pred_check_branch
      %41 = sbr.rel (0) target = $region13
    $region12: #{tpu_custom_call.1} parent=1 // pred_region
      %s43 = ssub.s32 512, 512
      %44 = vsyncadd [#allocation9], %s43
      %s45 = sshll.u32 [#allocation10], 4
      %s46 = int_to_ptr.vmem [resolvable:$true] %s45
      %51 = dma.hbm_to_vmem [thread:$0]  %s2, 512, %s46, [#allocation9], 128, 128, 8
    $region13: #{tpu_custom_call.1} parent=1 // pred_fallthru
      _
    // Predicated region
    $region14: #{tpu_custom_call.1} parent=1 // pred_check
      _
    $region15: #{tpu_custom_call.1} parent=1 // pred_check_branch
      %53 = sbr.rel (0) target = $region17
    $region16: #{tpu_custom_call.1} parent=1 // pred_region
      %s55 = ssub.s32 512, 512
      %56 = vsyncadd [#allocation12], %s55
      %s57 = sshll.u32 [#allocation11], 4
      %s58 = int_to_ptr.vmem [resolvable:$true] %s57
      %63 = dma.hbm_to_vmem [thread:$0]  %s3, 512, %s58, [#allocation12], 128, 128, 8
    $region17: #{tpu_custom_call.1} parent=1 // pred_fallthru
      _
    // Predicated region
    $region18: #{tpu_custom_call.1} parent=1 // pred_check
      _
    $region19: #{tpu_custom_call.1} parent=1 // pred_check_branch
      %65 = sbr.rel (0) target = $region21
    $region20: #{tpu_custom_call.1} parent=1 // pred_region
      %s67 = ssub.s32 512, 512
      %68 = vsyncadd [#allocation12], %s67
      %s69 = sshll.u32 [#allocation13], 4
      %s70 = int_to_ptr.vmem [resolvable:$true] %s69
      %75 = dma.hbm_to_vmem [thread:$0]  %s4, 512, %s70, [#allocation12], 128, 128, 8
    $region21: #{tpu_custom_call.1} parent=1 // pred_fallthru
      _
    // Predicated region
    $region22: #{tpu_custom_call.1} parent=1 // pred_check
      _
    $region23: #{tpu_custom_call.1} parent=1 // pred_check_branch
      %77 = sbr.rel (0) target = $region25
    $region24: #{tpu_custom_call.1} parent=1 // pred_region
      %s79 = ssub.s32 512, 512
      %80 = vsyncadd [#allocation15], %s79
      %s81 = sshll.u32 [#allocation14], 4
      %s82 = int_to_ptr.vmem [resolvable:$true] %s81
      %87 = dma.hbm_to_vmem [thread:$0]  %s5, 512, %s82, [#allocation15], 128, 128, 8
    $region25: #{tpu_custom_call.1} parent=1 // pred_fallthru
      _
    // Predicated region
    $region26: #{tpu_custom_call.1} parent=1 // pred_check
      _
    $region27: #{tpu_custom_call.1} parent=1 // pred_check_branch
      %89 = sbr.rel (0) target = $region29
    $region28: #{tpu_custom_call.1} parent=1 // pred_region
      %90 = dma.done [#allocation6], 512
    $region29: #{tpu_custom_call.1} parent=1 // pred_fallthru
      _
    // Predicated region
    $region30: #{tpu_custom_call.1} parent=1 // pred_check
      _
    $region31: #{tpu_custom_call.1} parent=1 // pred_check_branch
      %92 = sbr.rel (0) target = $region33
    $region32: #{tpu_custom_call.1} parent=1 // pred_region
      %93 = dma.done [#allocation9], 512
    $region33: #{tpu_custom_call.1} parent=1 // pred_fallthru
      _
    // Predicated region
    $region34: #{tpu_custom_call.1} parent=1 // pred_check
      _
    $region35: #{tpu_custom_call.1} parent=1 // pred_check_branch
      %95 = sbr.rel (0) target = $region37
    $region36: #{tpu_custom_call.1} parent=1 // pred_region
      %96 = dma.done [#allocation9], 512
    $region37: #{tpu_custom_call.1} parent=1 // pred_fallthru
      _
    // Predicated region
    $region38: #{tpu_custom_call.1} parent=1 // pred_check
      _
    $region39: #{tpu_custom_call.1} parent=1 // pred_check_branch
      %98 = sbr.rel (0) target = $region41
    $region40: #{tpu_custom_call.1} parent=1 // pred_region
      %99 = dma.done [#allocation12], 512
    $region41: #{tpu_custom_call.1} parent=1 // pred_fallthru
      _
    // Predicated region
    $region42: #{tpu_custom_call.1} parent=1 // pred_check
      _
    $region43: #{tpu_custom_call.1} parent=1 // pred_check_branch
      %101 = sbr.rel (0) target = $region45
    $region44: #{tpu_custom_call.1} parent=1 // pred_region
      %102 = dma.done [#allocation12], 512
    $region45: #{tpu_custom_call.1} parent=1 // pred_fallthru
      _
    // Predicated region
    $region46: #{tpu_custom_call.1} parent=1 // pred_check
      _
    $region47: #{tpu_custom_call.1} parent=1 // pred_check_branch
      %104 = sbr.rel (0) target = $region49
    $region48: #{tpu_custom_call.1} parent=1 // pred_region
      %105 = dma.done [#allocation15], 512
    $region49: #{tpu_custom_call.1} parent=1 // pred_fallthru
      _
    %p106 = scmp.eq.s32.totalorder 0, 0
    // Predicated region
    $region50: #{tpu_custom_call.1} parent=1 // pred_check
      %p107 = pneg %p106
    $region51: #{tpu_custom_call.1} parent=1 // pred_check_branch
      %109 = sbr.rel (%p107) target = $region53
    $region52: #{tpu_custom_call.1} parent=1 // pred_region
      %vm110 = vcmask 130048
      %111 = vst.msk [vmem:[#allocation2] sm:$0xff] %vm110, 0.0
      %112 = vst.msk [vmem:[#allocation3] sm:$0xff] %vm110, 0.0
      %113 = vst.msk [vmem:[#allocation4] sm:$0xff] %vm110, 0.0
    $region53: #{tpu_custom_call.1} parent=1 // pred_fallthru
      _
    %v114 = vld [vmem:[#allocation5] sm:$0xff]
    %v115 = vld [vmem:[#allocation5 + $0x8] sm:$0xff]
    %v116 = vld [vmem:[#allocation5 + $0x10] sm:$0xff]
    %v117 = vld [vmem:[#allocation5 + $0x18] sm:$0xff]
    %v118 = vld [vmem:[#allocation8] sm:$0xff]
    %v119 = vld [vmem:[#allocation8 + $0x8] sm:$0xff]
    %v120 = vld [vmem:[#allocation8 + $0x10] sm:$0xff]
    %v121 = vld [vmem:[#allocation8 + $0x18] sm:$0xff]
    %v122 = vld [vmem:[#allocation10] sm:$0xff]
    %v123 = vld [vmem:[#allocation10 + $0x8] sm:$0xff]
    %v124 = vld [vmem:[#allocation10 + $0x10] sm:$0xff]
    %v125 = vld [vmem:[#allocation10 + $0x18] sm:$0xff]
    %v126 = vld [vmem:[#allocation11] sm:$0xff]
    %v127 = vld [vmem:[#allocation11 + $0x8] sm:$0xff]
    %v128 = vld [vmem:[#allocation11 + $0x10] sm:$0xff]
    %v129 = vld [vmem:[#allocation11 + $0x18] sm:$0xff]
    %v130 = vld [vmem:[#allocation13] sm:$0xff]
    %v131 = vld [vmem:[#allocation13 + $0x8] sm:$0xff]
    %v132 = vld [vmem:[#allocation13 + $0x10] sm:$0xff]
    %v133 = vld [vmem:[#allocation13 + $0x18] sm:$0xff]
    %v134 = vld [vmem:[#allocation14] sm:$0xff]
    %v135 = vld [vmem:[#allocation14 + $0x8] sm:$0xff]
    %v136 = vld [vmem:[#allocation14 + $0x10] sm:$0xff]
    %v137 = vld [vmem:[#allocation14 + $0x18] sm:$0xff]
    %v138 = vmax.f32 %v134, 1e-06
    %v139 = vmax.f32 %v135, 1e-06
    %v140 = vmax.f32 %v136, 1e-06
    %v141 = vmax.f32 %v137, 1e-06
    %v142 = vmin.f32 %v138, 0.999999
    %v143 = vmin.f32 %v139, 0.999999
    %v144 = vmin.f32 %v140, 0.999999
    %v145 = vmin.f32 %v141, 0.999999
    %v146 = vmax.f32 %v114, 0.0
    %v147 = vmax.f32 %v115, 0.0
    %v148 = vmax.f32 %v116, 0.0
    %v149 = vmax.f32 %v117, 0.0
    %v150 = vmul.f32 %v114, %v118
    %v151 = vmul.f32 %v115, %v119
    %v152 = vmul.f32 %v116, %v120
    %v153 = vmul.f32 %v117, %v121
    %v154 = vsub.f32 %v146, %v150
    %v155 = vsub.f32 %v147, %v151
    %v156 = vsub.f32 %v148, %v152
    %v157 = vsub.f32 %v149, %v153
    %v158 = vand.u32 2147483647, %v114
    %v159 = vand.u32 2147483647, %v115
    %v160 = vand.u32 2147483647, %v116
    %v161 = vand.u32 2147483647, %v117
    %v162 = vsub.f32 0.0, %v158
    %v163 = vsub.f32 0.0, %v159
    %v164 = vsub.f32 0.0, %v160
    %v165 = vsub.f32 0.0, %v161
    %v166 = vmul.f32 %v162, 1.442695
    %v167 = vpow.pop %v166
    %v168 = vmul.f32 %v163, 1.442695
    %v169 = vpow.pop %v168
    %v170 = vmul.f32 %v164, 1.442695
    %v171 = vpow.pop %v170
    %v172 = vmul.f32 %v165, 1.442695
    %v173 = vpow.pop %v172
    %v174 = vadd.f32 %v167, 1.0
    %v175 = vadd.f32 %v169, 1.0
    %v176 = vadd.f32 %v171, 1.0
    %v177 = vadd.f32 %v173, 1.0
    %v178 = vlog2.pop %v174
    %v179 = vmul.f32 %v178, 0.6931472
    %v180 = vlog2.pop %v175
    %v181 = vmul.f32 %v180, 0.6931472
    %v182 = vlog2.pop %v176
    %v183 = vmul.f32 %v182, 0.6931472
    %v184 = vlog2.pop %v177
    %v185 = vmul.f32 %v184, 0.6931472
    %v186 = vadd.f32 %v154, %v179
    %v187 = vadd.f32 %v155, %v181
    %v188 = vadd.f32 %v156, %v183
    %v189 = vadd.f32 %v157, %v185
    %v190 = vmax.f32 %v122, 0.0
    %v191 = vmax.f32 %v123, 0.0
    %v192 = vmax.f32 %v124, 0.0
    %v193 = vmax.f32 %v125, 0.0
    %v194 = vmul.f32 %v122, %v126
    %v195 = vmul.f32 %v123, %v127
    %v196 = vmul.f32 %v124, %v128
    %v197 = vmul.f32 %v125, %v129
    %v198 = vsub.f32 %v190, %v194
    %v199 = vsub.f32 %v191, %v195
    %v200 = vsub.f32 %v192, %v196
    %v201 = vsub.f32 %v193, %v197
    %v202 = vand.u32 2147483647, %v122
    %v203 = vand.u32 2147483647, %v123
    %v204 = vand.u32 2147483647, %v124
    %v205 = vand.u32 2147483647, %v125
    %v206 = vsub.f32 0.0, %v202
    %v207 = vsub.f32 0.0, %v203
    %v208 = vsub.f32 0.0, %v204
    %v209 = vsub.f32 0.0, %v205
    %v210 = vmul.f32 %v206, 1.442695
    %v211 = vpow.pop %v210
    %v212 = vmul.f32 %v207, 1.442695
    %v213 = vpow.pop %v212
    %v214 = vmul.f32 %v208, 1.442695
    %v215 = vpow.pop %v214
    %v216 = vmul.f32 %v209, 1.442695
    %v217 = vpow.pop %v216
    %v218 = vadd.f32 %v211, 1.0
    %v219 = vadd.f32 %v213, 1.0
    %v220 = vadd.f32 %v215, 1.0
    %v221 = vadd.f32 %v217, 1.0
    %v222 = vlog2.pop %v218
    %v223 = vmul.f32 %v222, 0.6931472
    %v224 = vlog2.pop %v219
    %v225 = vmul.f32 %v224, 0.6931472
    %v226 = vlog2.pop %v220
    %v227 = vmul.f32 %v226, 0.6931472
    %v228 = vlog2.pop %v221
    %v229 = vmul.f32 %v228, 0.6931472
    %v230 = vadd.f32 %v198, %v223
    %v231 = vadd.f32 %v199, %v225
    %v232 = vadd.f32 %v200, %v227
    %v233 = vadd.f32 %v201, %v229
    %v234 = vsub.f32 %v130, %v142
    %v235 = vsub.f32 %v131, %v143
    %v236 = vsub.f32 %v132, %v144
    %v237 = vsub.f32 %v133, %v145
    %v238 = vmul.f32 %v234, %v234
    %v239 = vmul.f32 %v235, %v235
    %v240 = vmul.f32 %v236, %v236
    %v241 = vmul.f32 %v237, %v237
    %v242 = vld [vmem:[#allocation2] sm:$0xff]
    %vm243 = vcmask 130048
    %v244 = vsel %vm243, %v186, 0.0
    %v245 = vsel %vm243, %v187, 0.0
    %v246 = vadd.f32 %v244, %v245
    %v247 = vsel %vm243, %v188, 0.0
    %v248 = vadd.f32 %v246, %v247
    %v249 = vsel %vm243, %v189, 0.0
    %v250 = vadd.f32 %v248, %v249
    %v251 = vadd.f32 %v242, %v250
    %252 = vst.msk [vmem:[#allocation2] sm:$0xff] %vm243, %v251
    %v253 = vld [vmem:[#allocation3] sm:$0xff]
    %v254 = vsel %vm243, %v230, 0.0
    %v255 = vsel %vm243, %v231, 0.0
    %v256 = vadd.f32 %v254, %v255
    %v257 = vsel %vm243, %v232, 0.0
    %v258 = vadd.f32 %v256, %v257
    %v259 = vsel %vm243, %v233, 0.0
    %v260 = vadd.f32 %v258, %v259
    %v261 = vadd.f32 %v253, %v260
    %262 = vst.msk [vmem:[#allocation3] sm:$0xff] %vm243, %v261
    %v263 = vld [vmem:[#allocation4] sm:$0xff]
    %v264 = vsel %vm243, %v238, 0.0
    %v265 = vsel %vm243, %v239, 0.0
    %v266 = vadd.f32 %v264, %v265
    %v267 = vsel %vm243, %v240, 0.0
    %v268 = vadd.f32 %v266, %v267
    %v269 = vsel %vm243, %v241, 0.0
    %v270 = vadd.f32 %v268, %v269
    %v271 = vadd.f32 %v263, %v270
    %272 = vst.msk [vmem:[#allocation4] sm:$0xff] %vm243, %v271
    // Predicated region
    $region54: #{tpu_custom_call.1} parent=1 // pred_check
      %p273 = pneg %p106
    $region55: #{tpu_custom_call.1} parent=1 // pred_check_branch
      %275 = sbr.rel (%p273) target = $region57
    $region56: #{tpu_custom_call.1} parent=1 // pred_region
      %v276 = vld [vmem:[#allocation2] sm:$0xff]
      %v277 = vsel %vm243, %v276, 0.0
      %278 = vadd.xlane.f32.xlu0 %v277
      %v279 = vpop.xlane.xlu0 %278
      %v280 = vrot.slane %v279, 4
      %v281 = vadd.f32 %v279, %v280
      %v282 = vrot.slane %v281, 2
      %v283 = vadd.f32 %v281, %v282
      %v284 = vrot.slane %v283, 1
      %v285 = vadd.f32 %v283, %v284
      %s286 = vtos %v285
      %s287 = smul.f32 %s286, 0.001953125
      %s288 = scalar_lea.smem [#allocation16], 0
      %289 = sst [smem:[%s288]] %s287
      %v290 = vld [vmem:[#allocation3] sm:$0xff]
      %v291 = vsel %vm243, %v290, 0.0
      %292 = vadd.xlane.f32.xlu0 %v291
      %v293 = vpop.xlane.xlu0 %292
      %v294 = vrot.slane %v293, 4
      %v295 = vadd.f32 %v293, %v294
      %v296 = vrot.slane %v295, 2
      %v297 = vadd.f32 %v295, %v296
      %v298 = vrot.slane %v297, 1
      %v299 = vadd.f32 %v297, %v298
      %s300 = vtos %v299
      %s301 = smul.f32 %s300, 0.001953125
      %s302 = scalar_lea.smem [#allocation16], 1
      %303 = sst [smem:[%s302]] %s301
      %v304 = vld [vmem:[#allocation4] sm:$0xff]
      %v305 = vsel %vm243, %v304, 0.0
      %306 = vadd.xlane.f32.xlu0 %v305
      %v307 = vpop.xlane.xlu0 %306
      %v308 = vrot.slane %v307, 4
      %v309 = vadd.f32 %v307, %v308
      %v310 = vrot.slane %v309, 2
      %v311 = vadd.f32 %v309, %v310
      %v312 = vrot.slane %v311, 1
      %v313 = vadd.f32 %v311, %v312
      %s314 = vtos %v313
      %s315 = smul.f32 %s314, 0.001953125
      %s316 = scalar_lea.smem [#allocation16], 2
      %317 = sst [smem:[%s316]] %s315
    $region57: #{tpu_custom_call.1} parent=1 // pred_fallthru
      _
    // Predicated region
    $region58: #{tpu_custom_call.1} parent=1 // pred_check
      _
    $region59: #{tpu_custom_call.1} parent=1 // pred_check_branch
      %319 = sbr.rel (0) target = $region61
    $region60: #{tpu_custom_call.1} parent=1 // pred_region
      %s321 = ssub.s32 16, 16
      %322 = vsyncadd [#allocation7], %s321
      %325 = dma.smem_to_hbm [#allocation16], 16, %s6, [#allocation7]
    $region61: #{tpu_custom_call.1} parent=1 // pred_fallthru
      _
    // Predicated region
    $region62: #{tpu_custom_call.1} parent=1 // pred_check
      _
    $region63: #{tpu_custom_call.1} parent=1 // pred_check_branch
      %327 = sbr.rel (0) target = $region65
    $region64: #{tpu_custom_call.1} parent=1 // pred_region
      %328 = dma.done [#allocation7], 16
    $region65: #{tpu_custom_call.1} parent=1 // pred_fallthru
      _
    %329 = sfence
    %330 = vsyncpa [#allocation6], 1
    %331 = vsyncpa [#allocation9], 1
    %332 = vsyncpa [#allocation12], 1
    %333 = vsyncpa [#allocation15], 1
    %334 = vsyncpa [#allocation7], 1

</llo_original>
